<compile_context>
chip_gen: v5e
topology: v5e:2x2
jax: 0.10.0
libtpu: 0.0.40
codegen_flags: <defaults>
</compile_context>

<pallas_src>
import functools

import jax
import jax.numpy as jnp
from jax.experimental import pallas as pl
from jax.experimental.pallas import tpu as pltpu

# ---- module hyper-parameters (eval path) -----------------------------------
NUM_CONCEPTS = 1
TEXT_SEQ_LEN = 8          # small synthetic seq len (module's text_seq_len)
DIM_INPUT = 32
DIM_OUTPUT = 64
EVAL_BETA = 0.7
EVAL_TEMPERATURE = 0.15
FRAC_GRADIENT_CONCEPT_EMBED = 0.1   # eval-value-preserving; not applied here


def _rank1_edit_kernel(x_ref, weff_ref, v_ref, o_ref, out_ref, *,
                       beta, inv_temperature):
    """Fused eval forward (single concept).

    x_ref    : (T,  Di)  tile of flattened text encodings (native dtype)
    weff_ref : (Di, Do)  W^T - outer(v/e, W@i), same dtype as x
    v_ref    : (1,  Di)  (C_inv @ i) / i_energy, f32
    o_ref    : (1,  Do)  concept_outputs[concept_id], f32
    out_ref  : (T,  Do)  output tile (native dtype)
    """
    x = x_ref[...]                                                    # (T, Di)

    # Single dense MXU pass (f32 accumulation): contains both text_enc @ W^T
    # and the rank-1 orthogonal subtraction (folded into W_eff).
    out = jnp.dot(x, weff_ref[...],
                  preferred_element_type=jnp.float32)                 # (T, Do) f32

    # sim / i_energy — f32 VPU multiply + XLU lane reduce (no MXU, no bf16
    # elementwise math: v5e's VPU/EUP have no bf16 path and the sigmoid with
    # temperature=0.15 is precision-sensitive).
    xf = x.astype(jnp.float32)
    sim = jnp.sum(xf * v_ref[...], axis=-1, keepdims=True)            # (T, 1) f32

    # sigmoid gating on the EUP, broadcast against the concept output row.
    gate = jax.nn.sigmoid((sim - beta) * inv_temperature)             # (T, 1) f32

    out_ref[...] = (out + gate * o_ref[...]).astype(out_ref.dtype)


def _choose_tile(bn, bytes_per_row, *, target_steps=8, cap=4096,
                 vmem_budget=8 << 20):
    """Row tile for the flattened BN axis.

    * Large tiles (HBM roofline; per-grid-step overhead ~0.35 us), capped at
      `cap` rows and at a double-buffered (in + out) VMEM budget that is
      comfortable even on v5e's 16 MiB / v7x's 64 MiB scoped VMEM.
    * Clamped so the grid keeps >= `target_steps` steps, so the "parallel"
      BN axis can shard across v7x's two TensorCores.
    * No exact-divisor requirement: callers pair this with a cdiv grid, so
      any BN (e.g. b * 77) keeps large pipelined tiles with a partial tail.
    """
    byte_cap = max(8, vmem_budget // (2 * max(bytes_per_row, 1)))
    tile = -(-bn // target_steps)                 # ceil(bn / target_steps)
    tile = min(tile, cap, byte_cap)
    tile = max(8, -(-tile // 8) * 8)              # sublane multiple
    tile = min(tile, -(-bn // 8) * 8)             # never bigger than padded BN
    return tile


def rank1_edit_forward(text_enc, weight, c_inv, ema_concept_text_enc,
                       concept_output, *,
                       beta=EVAL_BETA, temperature=EVAL_TEMPERATURE):
    """Eval forward of Rank1EditModule (single concept_id=0)."""
    b, n, di = text_enc.shape
    do = weight.shape[0]
    x_dtype = text_enc.dtype

    # NOTE: the frac_gradient_concept_embed blend is value-preserving (it only
    # rescales gradients), so the eval output is unchanged by omitting it and
    # we save an extra HBM round-trip over text_enc.

    # ---- tiny per-call constants (parameters only, independent of text_enc) --
    i_vec = ema_concept_text_enc[0].astype(jnp.float32)        # (Di,)
    o_vec = concept_output[0].astype(jnp.float32)              # (Do,)
    v = c_inv.astype(jnp.float32) @ i_vec                      # (Di,)  C_inv @ i
    i_energy = jnp.dot(i_vec, v)                               # scalar i·C_inv·i
    v_scaled = v / i_energy                                    # (Di,)
    concept_out = weight.astype(jnp.float32) @ i_vec           # (Do,)  einsum('ci,oi->co')
    w_eff = (weight.T.astype(jnp.float32)
             - jnp.outer(v_scaled, concept_out)).astype(x_dtype)   # (Di, Do)

    # ---- activation stays in its native dtype; no wrapper cast pass ---------
    x2d = text_enc.reshape(b * n, di)
    bn = b * n
    itemsize = jnp.dtype(x_dtype).itemsize
    bytes_per_row = di * itemsize + do * itemsize              # x read + out write
    tile = _choose_tile(bn, bytes_per_row)
    grid = (pl.cdiv(bn, tile),)                                # partial tail OK

    kernel = functools.partial(_rank1_edit_kernel,
                               beta=float(beta),
                               inv_temperature=1.0 / float(temperature))

    out2d = pl.pallas_call(
        kernel,
        out_shape=jax.ShapeDtypeStruct((bn, do), x_dtype),
        grid=grid,
        in_specs=[
            pl.BlockSpec((tile, di), lambda i: (i, 0)),        # text tile (pipelined)
            pl.BlockSpec((di, do), lambda i: (0, 0)),          # W_eff (VMEM-resident)
            pl.BlockSpec((1, di), lambda i: (0, 0)),           # v / i_energy (f32)
            pl.BlockSpec((1, do), lambda i: (0, 0)),           # concept output o (f32)
        ],
        out_specs=pl.BlockSpec((tile, do), lambda i: (i, 0)),
        compiler_params=pltpu.CompilerParams(
            dimension_semantics=("parallel",)),                # megacore-shard BN
    )(x2d, w_eff, v_scaled.reshape(1, di), o_vec.reshape(1, do))

    return out2d.reshape(b, n, do)


def rank1_edit_reference(text_enc, weight, c_inv, iv, ov):
    """Pure-JAX f32 reference of the same eval forward path (mirrors the PyTorch einsums)."""
    text_enc = text_enc.astype(jnp.float32)
    weight = weight.astype(jnp.float32)
    i_energy = jnp.einsum('co,oi,ci->c', iv, c_inv, iv)
    sim = jnp.einsum('bno,oi,ci->cbn', text_enc, c_inv, iv)
    text_out = jnp.einsum('bni,oi->bno', text_enc, weight)
    concept_out = jnp.einsum('ci,oi->co', iv, weight)
    w_em = text_out - jnp.einsum('cbn,co,c->bno', sim, concept_out,
                                 1.0 / i_energy)
    sig = jax.nn.sigmoid(
        (sim[..., None] / i_energy[:, None, None, None] - EVAL_BETA)
        / EVAL_TEMPERATURE)
    gated = jnp.sum(sig * ov[:, None, None, :], axis=0)
    return w_em + gated


if __name__ == "__main__":
    key = jax.random.PRNGKey(0)
    k_text, k_w, k_c, k_i, k_o = jax.random.split(key, 5)

    batch = 2
    # text encoding input (batch, seq, dim_input)
    text_enc = jax.random.normal(k_text, (batch, TEXT_SEQ_LEN, DIM_INPUT),
                                 dtype=jnp.float32)

    # nn.Linear(dim_input -> dim_output, bias=False) weight: (dim_output, dim_input)
    weight = 0.02 * jax.random.normal(k_w, (DIM_OUTPUT, DIM_INPUT),
                                      dtype=jnp.float32)

    # synthetic SPD covariance C and its inverse (stands in for the .pt file)
    A = jax.random.normal(k_c, (DIM_INPUT, DIM_INPUT), dtype=jnp.float32)
    C = A @ A.T / DIM_INPUT + 0.1 * jnp.eye(DIM_INPUT, dtype=jnp.float32)
    C_inv = jnp.linalg.inv(C)

    # buffers that would have been populated during training (eval path asserts
    # they are initialized, so fill them with deterministic non-zero values)
    ema_concept_text_enc = jax.random.normal(
        k_i, (NUM_CONCEPTS, DIM_INPUT), dtype=jnp.float32)
    concept_output = jax.random.normal(
        k_o, (NUM_CONCEPTS, DIM_OUTPUT), dtype=jnp.float32)

    # ---- check 1: f32 path, exact-dividing BN -------------------------------
    out = rank1_edit_forward(text_enc, weight, C_inv,
                             ema_concept_text_enc, concept_output)
    out = jax.block_until_ready(out)
    ref = rank1_edit_reference(text_enc, weight, C_inv,
                               ema_concept_text_enc, concept_output)
    assert out.shape == (batch, TEXT_SEQ_LEN, DIM_OUTPUT)
    assert jnp.allclose(out, ref, atol=1e-4, rtol=1e-4)

    # ---- check 2: bf16 activations + ragged BN (cdiv tail block) ------------
    batch2 = 9                                           # bn=72 -> tile 16, grid 5 (partial tail)
    text_enc2 = jax.random.normal(
        jax.random.PRNGKey(1), (batch2, TEXT_SEQ_LEN, DIM_INPUT),
        dtype=jnp.float32).astype(jnp.bfloat16)
    out2 = rank1_edit_forward(text_enc2, weight, C_inv,
                              ema_concept_text_enc, concept_output)
    out2 = jax.block_until_ready(out2)
    ref2 = rank1_edit_reference(text_enc2, weight, C_inv,
                                ema_concept_text_enc, concept_output)
    assert out2.shape == (batch2, TEXT_SEQ_LEN, DIM_OUTPUT)
    assert out2.dtype == jnp.bfloat16
    assert jnp.allclose(out2.astype(jnp.float32), ref2, atol=1e-1, rtol=1e-1)

    # TODO(synk): training-path EMA buffer / initted-flag updates, the
    # frac_gradient straight-through trick, and the multi-concept cholesky/QR
    # branch (torch.linalg.qr) are host/state logic with no clean single-kernel
    # Pallas equivalent; only the eval forward hot path is fused.
    print("KERNEL_OK")
</pallas_src>

<mosaic_0001>
module attributes {stable_mosaic.version = 11 : i64} {
  func.func @_rank1_edit_kernel(%arg0: i32, %arg1: memref<8x32xf32, #tpu.memory_space<vmem>>, %arg2: memref<32x64xf32, #tpu.memory_space<vmem>>, %arg3: memref<1x32xf32, #tpu.memory_space<vmem>>, %arg4: memref<1x64xf32, #tpu.memory_space<vmem>>, %arg5: memref<8x64xf32, #tpu.memory_space<vmem>>) attributes {dimension_semantics = [#tpu.dimension_semantics<parallel>], iteration_bounds = array<i64: 2>, scalar_prefetch = 0 : i64, scratch_operands = 0 : i64, tpu.core_type = #tpu.core_type<tc>, window_params = [{transform_indices = @transform_0, window_bounds = array<i64: 8, 32>}, {pipeline_mode = #tpu.pipeline_mode<synchronous>, transform_indices = @transform_1, window_bounds = array<i64: 32, 64>}, {pipeline_mode = #tpu.pipeline_mode<synchronous>, transform_indices = @transform_2, window_bounds = array<i64: 1, 32>}, {pipeline_mode = #tpu.pipeline_mode<synchronous>, transform_indices = @transform_3, window_bounds = array<i64: 1, 64>}, {transform_indices = @transform_4, window_bounds = array<i64: 8, 64>}]} {
    %c0 = arith.constant 0 : index
    %c0_0 = arith.constant 0 : index
    %0 = vector.load %arg1[%c0, %c0_0] : memref<8x32xf32, #tpu.memory_space<vmem>>, vector<8x32xf32>
    %c0_1 = arith.constant 0 : index
    %c0_2 = arith.constant 0 : index
    %1 = vector.load %arg2[%c0_1, %c0_2] : memref<32x64xf32, #tpu.memory_space<vmem>>, vector<32x64xf32>
    %cst = arith.constant dense<0.000000e+00> : vector<8x64xf32>
    %2 = tpu.matmul %0, %1, %cst {dimension_numbers = #tpu.dot_dimension_numbers<[1], [0], [0], [1], [0, 0, 1, 1], [], []>} : vector<8x32xf32>, vector<32x64xf32>, vector<8x64xf32> -> vector<8x64xf32>
    %c0_3 = arith.constant 0 : index
    %c0_4 = arith.constant 0 : index
    %3 = vector.load %arg3[%c0_3, %c0_4] : memref<1x32xf32, #tpu.memory_space<vmem>>, vector<1x32xf32>
    %4 = vector.broadcast %3 : vector<1x32xf32> to vector<8x32xf32>
    %5 = arith.mulf %0, %4 : vector<8x32xf32>
    %cst_5 = arith.constant dense<0.000000e+00> : vector<8xf32>
    %6 = vector.multi_reduction <add>, %5, %cst_5 [1] : vector<8x32xf32> to vector<8xf32>
    %7 = vector.shape_cast %6 : vector<8xf32> to vector<8x1xf32>
    %cst_6 = arith.constant 0.699999988 : f32
    %8 = vector.broadcast %cst_6 : f32 to vector<8x1xf32>
    %9 = arith.subf %7, %8 : vector<8x1xf32>
    %cst_7 = arith.constant 6.66666651 : f32
    %10 = vector.broadcast %cst_7 : f32 to vector<8x1xf32>
    %11 = arith.mulf %9, %10 : vector<8x1xf32>
    %12 = arith.negf %11 : vector<8x1xf32>
    %13 = math.exp %12 : vector<8x1xf32>
    %cst_8 = arith.constant 1.000000e+00 : f32
    %14 = vector.broadcast %cst_8 : f32 to vector<8x1xf32>
    %15 = arith.addf %14, %13 : vector<8x1xf32>
    %16 = arith.divf %14, %15 : vector<8x1xf32>
    %c0_9 = arith.constant 0 : index
    %c0_10 = arith.constant 0 : index
    %17 = vector.load %arg4[%c0_9, %c0_10] : memref<1x64xf32, #tpu.memory_space<vmem>>, vector<1x64xf32>
    %18 = vector.broadcast %16 : vector<8x1xf32> to vector<8x64xf32>
    %19 = vector.broadcast %17 : vector<1x64xf32> to vector<8x64xf32>
    %20 = arith.mulf %18, %19 : vector<8x64xf32>
    %21 = arith.addf %2, %20 : vector<8x64xf32>
    %c0_11 = arith.constant 0 : index
    %c0_12 = arith.constant 0 : index
    %22 = vector.load %arg5[%c0_11, %c0_12] : memref<8x64xf32, #tpu.memory_space<vmem>>, vector<8x64xf32>
    tpu.vector_store %arg5[%c0_11, %c0_12], %21 {strides = array<i32>} : memref<8x64xf32, #tpu.memory_space<vmem>>, vector<8x64xf32>,
    return
  }
  func.func @transform_0(%arg0: i32) -> (i32, i32) {
    %c0_i32 = arith.constant 0 : i32
    %c0_i32_0 = arith.constant 0 : i32
    return %arg0, %c0_i32 : i32, i32
  }
  func.func @transform_1(%arg0: i32) -> (i32, i32) {
    %c0_i32 = arith.constant 0 : i32
    %c0_i32_0 = arith.constant 0 : i32
    %c0_i32_1 = arith.constant 0 : i32
    return %c0_i32, %c0_i32_0 : i32, i32
  }
  func.func @transform_2(%arg0: i32) -> (i32, i32) {
    %c0_i32 = arith.constant 0 : i32
    %c0_i32_0 = arith.constant 0 : i32
    %c0_i32_1 = arith.constant 0 : i32
    return %c0_i32, %c0_i32_0 : i32, i32
  }
  func.func @transform_3(%arg0: i32) -> (i32, i32) {
    %c0_i32 = arith.constant 0 : i32
    %c0_i32_0 = arith.constant 0 : i32
    %c0_i32_1 = arith.constant 0 : i32
    return %c0_i32, %c0_i32_0 : i32, i32
  }
  func.func @transform_4(%arg0: i32) -> (i32, i32) {
    %c0_i32 = arith.constant 0 : i32
    %c0_i32_0 = arith.constant 0 : i32
    return %arg0, %c0_i32 : i32, i32
  }
}

</mosaic_0001>

<llo_original>
// kernel: tpu_custom_call.1
$region0: #{tpu_custom_call.1}
  #allocation0 [shape = 'u32[]', space=smem, size = 0x4, offset = 0x4, fixed_abs, tag = 'smem constant byte address 0x4 - core index']
  #allocation1 [shape = 'u32[72,128]{1,0:T(1,128)}', space=vmem, size = 0x9000, scoped, tag = 'internal scratch']
  %s0 = inlined_call_operand.hbm [shape: f32[16,32], index: 0, kind: input, shape index: {}]
  %s1 = inlined_call_operand.hbm [shape: f32[32,64], index: 1, kind: input, shape index: {}]
  %s2 = inlined_call_operand.vmem [shape: f32[1,32], index: 2, kind: input, shape index: {}]
  %s3 = inlined_call_operand.vmem [shape: f32[1,64], index: 3, kind: input, shape index: {}]
  %s4 = inlined_call_operand.hbm [shape: f32[16,64], index: 4, kind: output, shape index: {}]
  %s5 = sld [smem:[#allocation0]]
  $region57: #{tpu_custom_call.1} parent=0
    _
  %s7 = ssub.s32 1, %s5
  %s8 = scalar_select 0, %s7, %s5
  $region1: #{tpu_custom_call.1} parent=0
    #allocation2 [shape = 'u8[8192]{0}', space=vmem, size = 0x2000, scoped, tag = 'input window, operand 0']
    #allocation3 [shape = 's32[2]{0}', space=sflag, size = 0x8, scoped, tag = 'scoped memory for tpu_custom_call.1']
    #allocation4 [shape = 's32[2]{0}', space=sflag, size = 0x8, scoped, tag = 'scoped memory for tpu_custom_call.1']
    #allocation5 [shape = 'u8[16384]{0}', space=vmem, size = 0x4000, scoped, tag = 'input window, operand 1, single buffered']
    #allocation6 [shape = 's32[1]{0}', space=sflag, size = 0x4, scoped, tag = 'scoped memory for tpu_custom_call.1']
    #allocation7 [shape = 'u8[8192]{0}', space=vmem, size = 0x2000, scoped, tag = 'output window, operand 0']
    %9 = vsyncpa [#allocation3], 0
    %s10 = scalar_lea.sflag [#allocation3], 1
    %11 = vsyncpa %s10, 0
    %12 = vsyncpa [#allocation6], 0
    %13 = vsyncpa [#allocation4], 0
    %s14 = scalar_lea.sflag [#allocation4], 1
    %15 = vsyncpa %s14, 0
    loop: start=0, step=1, limit=4
    $region2: #{tpu_custom_call.1} parent=1 // loop_pre_header
      _
    $region3: #{tpu_custom_call.1} parent=1 // loop_header
      %s17 = sphi 0, %s21
      %p18 = scmp.ge.s32.totalorder %s17, 4
      %s27 = sphi 0, %s29
      %s30 = sphi 0, %s27
      %s31 = sphi 0, %s30
      %s47 = sphi 0, %s31
      %s51 = sphi 0, %s51
      %s53 = sphi 0, %s51
      %s54 = sphi 0, %s53
      %s68 = sphi 0, %s54
      %s72 = sphi 0, %s72
      %s74 = sphi 0, %s72
      %s75 = sphi 0, %s74
      %s89 = sphi 0, %s75
      %s93 = sphi 0, %s93
      %s95 = sphi 0, %s93
      %s96 = sphi 0, %s95
      %s110 = sphi 0, %s96
      %s116 = sphi 0, %s118
      %s119 = sphi 0, %s116
      %s120 = sphi 0, %s119
      %s136 = sphi 0, %s120
    $region4: #{tpu_custom_call.1} parent=1 // loop_header_branch
      %20 = sbr.rel (%p18) target = $region8
    $region5: #{tpu_custom_call.1} parent=1 // loop_body
      %s22 = ssub.s32 %s17, 1
      %s23 = ssub.s32 %s17, 2
      %s24 = sadd.s32 %s17, 1
      %s25 = ssub.s32 %s17, %s24
      %p26 = scmp.eq.s32.totalorder %s25, 0
      %s28 = sadd.s32 %s27, 1
      %s29 = scalar_select %p26, %s27, %s28
      %p32 = pneg %p26
      %p33 = scmp.eq.s32.totalorder %s17, 1
      %p34 = por %p32, %p33
      %p35 = scmp.ne.s32.totalorder %s27, %s30
      %p36 = scmp.eq.s32.totalorder %s17, 0
      %p37 = por %p35, %p36
      %p38 = scmp.ne.s32.totalorder %s27, %s30
      %p39 = scmp.eq.s32.totalorder %s22, 1
      %p40 = por %p38, %p39
      %p41 = scmp.ne.s32.totalorder %s30, %s31
      %p42 = scmp.eq.s32.totalorder %s22, 0
      %p43 = por %p41, %p42
      %p44 = scmp.ne.s32.totalorder %s30, %s31
      %p45 = scmp.eq.s32.totalorder %s23, 1
      %p46 = por %p44, %p45
      %p48 = scmp.ne.s32.totalorder %s31, %s47
      %p49 = scmp.eq.s32.totalorder %s23, 0
      %p50 = por %p48, %p49
      %s52 = sadd.s32 %s51, 1
      %p55 = scmp.eq.s32.totalorder %s17, 1
      %p56 = scmp.ne.s32.totalorder %s51, %s53
      %p57 = scmp.eq.s32.totalorder %s17, 0
      %p58 = por %p56, %p57
      %p59 = scmp.ne.s32.totalorder %s51, %s53
      %p60 = scmp.eq.s32.totalorder %s22, 1
      %p61 = por %p59, %p60
      %p62 = scmp.ne.s32.totalorder %s53, %s54
      %p63 = scmp.eq.s32.totalorder %s22, 0
      %p64 = por %p62, %p63
      %p65 = scmp.ne.s32.totalorder %s53, %s54
      %p66 = scmp.eq.s32.totalorder %s23, 1
      %p67 = por %p65, %p66
      %p69 = scmp.ne.s32.totalorder %s54, %s68
      %p70 = scmp.eq.s32.totalorder %s23, 0
      %p71 = por %p69, %p70
      %s73 = sadd.s32 %s72, 1
      %p76 = scmp.eq.s32.totalorder %s17, 1
      %p77 = scmp.ne.s32.totalorder %s72, %s74
      %p78 = scmp.eq.s32.totalorder %s17, 0
      %p79 = por %p77, %p78
      %p80 = scmp.ne.s32.totalorder %s72, %s74
      %p81 = scmp.eq.s32.totalorder %s22, 1
      %p82 = por %p80, %p81
      %p83 = scmp.ne.s32.totalorder %s74, %s75
      %p84 = scmp.eq.s32.totalorder %s22, 0
      %p85 = por %p83, %p84
      %p86 = scmp.ne.s32.totalorder %s74, %s75
      %p87 = scmp.eq.s32.totalorder %s23, 1
      %p88 = por %p86, %p87
      %p90 = scmp.ne.s32.totalorder %s75, %s89
      %p91 = scmp.eq.s32.totalorder %s23, 0
      %p92 = por %p90, %p91
      %s94 = sadd.s32 %s93, 1
      %p97 = scmp.eq.s32.totalorder %s17, 1
      %p98 = scmp.ne.s32.totalorder %s93, %s95
      %p99 = scmp.eq.s32.totalorder %s17, 0
      %p100 = por %p98, %p99
      %p101 = scmp.ne.s32.totalorder %s93, %s95
      %p102 = scmp.eq.s32.totalorder %s22, 1
      %p103 = por %p101, %p102
      %p104 = scmp.ne.s32.totalorder %s95, %s96
      %p105 = scmp.eq.s32.totalorder %s22, 0
      %p106 = por %p104, %p105
      %p107 = scmp.ne.s32.totalorder %s95, %s96
      %p108 = scmp.eq.s32.totalorder %s23, 1
      %p109 = por %p107, %p108
      %p111 = scmp.ne.s32.totalorder %s96, %s110
      %p112 = scmp.eq.s32.totalorder %s23, 0
      %p113 = por %p111, %p112
      %s114 = ssub.s32 %s17, %s24
      %p115 = scmp.eq.s32.totalorder %s114, 0
      %s117 = sadd.s32 %s116, 1
      %s118 = scalar_select %p115, %s116, %s117
      %p121 = pneg %p115
      %p122 = scmp.eq.s32.totalorder %s17, 1
      %p123 = por %p121, %p122
      %p124 = scmp.ne.s32.totalorder %s116, %s119
      %p125 = scmp.eq.s32.totalorder %s17, 0
      %p126 = por %p124, %p125
      %p127 = scmp.ne.s32.totalorder %s116, %s119
      %p128 = scmp.eq.s32.totalorder %s22, 1
      %p129 = por %p127, %p128
      %p130 = scmp.ne.s32.totalorder %s119, %s120
      %p131 = scmp.eq.s32.totalorder %s22, 0
      %p132 = por %p130, %p131
      %p133 = scmp.ne.s32.totalorder %s119, %s120
      %p134 = scmp.eq.s32.totalorder %s23, 1
      %p135 = por %p133, %p134
      %p137 = scmp.ne.s32.totalorder %s120, %s136
      %p138 = scmp.eq.s32.totalorder %s23, 0
      %p139 = por %p137, %p138
      %p140 = scmp.le.s32.totalorder 1, %s17
      %p141 = scmp.lt.s32.totalorder %s17, 3
      %p142 = pnand %p140, %p141
      %p143 = pneg %p142
      // Predicated region
      $region9: #{tpu_custom_call.1} parent=5 // pred_check
        _
      $region10: #{tpu_custom_call.1} parent=5 // pred_check_branch
        %145 = sbr.rel (%p142) target = $region12
      $region11: #{tpu_custom_call.1} parent=5 // pred_region
        %s146 = ssub.s32 %s17, 1
        // Predicated region
        $region13: #{tpu_custom_call.1} parent=11 // pred_check
          %p147 = pneg %p64
        $region14: #{tpu_custom_call.1} parent=11 // pred_check_branch
          %149 = sbr.rel (%p147) target = $region16
        $region15: #{tpu_custom_call.1} parent=11 // pred_region
          %151 = vsyncadd [#allocation6], 0
          %s152 = sshll.u32 %s1, 4
          %s153 = int_to_ptr.hbm [resolvable:$true] %s152
          %s154 = sshll.u32 [#allocation5], 4
          %s155 = int_to_ptr.vmem [resolvable:$true] %s154
          %160 = dma.hbm_to_vmem [thread:$0]  %s153, 512, %s155, [#allocation6], 128, 128, 8
        $region16: #{tpu_custom_call.1} parent=11 // pred_fallthru
          _
        // Predicated region
        $region17: #{tpu_custom_call.1} parent=11 // pred_check
          %p161 = pneg %p85
        $region18: #{tpu_custom_call.1} parent=11 // pred_check_branch
          %163 = sbr.rel (%p161) target = $region20
        $region19: #{tpu_custom_call.1} parent=11 // pred_region
          _
        $region20: #{tpu_custom_call.1} parent=11 // pred_fallthru
          _
        // Predicated region
        $region21: #{tpu_custom_call.1} parent=11 // pred_check
          %p164 = pneg %p106
        $region22: #{tpu_custom_call.1} parent=11 // pred_check_branch
          %166 = sbr.rel (%p164) target = $region24
        $region23: #{tpu_custom_call.1} parent=11 // pred_region
          _
        $region24: #{tpu_custom_call.1} parent=11 // pred_fallthru
          _
      $region12: #{tpu_custom_call.1} parent=5 // pred_fallthru
        _
      %p167 = scmp.lt.s32.totalorder %s17, 2
      // Predicated region
      $region25: #{tpu_custom_call.1} parent=5 // pred_check
        %p168 = pneg %p167
      $region26: #{tpu_custom_call.1} parent=5 // pred_check_branch
        %170 = sbr.rel (%p168) target = $region28
      $region27: #{tpu_custom_call.1} parent=5 // pred_region
        // Predicated region
        $region29: #{tpu_custom_call.1} parent=27 // pred_check
          %p171 = pneg %p37
        $region30: #{tpu_custom_call.1} parent=27 // pred_check_branch
          %173 = sbr.rel (%p171) target = $region32
        $region31: #{tpu_custom_call.1} parent=27 // pred_region
          %s174 = sand.u32 %s27, 1
          %s175 = scalar_lea.sflag [#allocation3], %s174
          %s176 = sand.u32 %s27, 1
          %s177 = smul.addr %s176, 8
          %s178 = scalar_lea.vmem [#allocation2], %s177
          %180 = vsyncadd %s175, 0
          %s181 = smul.addr %s17, 8
          %s182 = scalar_lea.hbm %s0, %s181
          %s184 = sshll.u32 %s182, 4
          %s185 = int_to_ptr.hbm [resolvable:$true] %s184
          %s186 = sshll.u32 %s178, 4
          %s187 = int_to_ptr.vmem [resolvable:$true] %s186
          %189 = dma.hbm_to_vmem [thread:$0]  %s185, 128, %s187, %s175
        $region32: #{tpu_custom_call.1} parent=27 // pred_fallthru
          _
      $region28: #{tpu_custom_call.1} parent=5 // pred_fallthru
        _
      %p190 = scmp.le.s32.totalorder 1, %s17
      %p191 = scmp.lt.s32.totalorder %s17, 3
      %p192 = pnand %p190, %p191
      %p193 = pneg %p192
      // Predicated region
      $region33: #{tpu_custom_call.1} parent=5 // pred_check
        _
      $region34: #{tpu_custom_call.1} parent=5 // pred_check_branch
        %195 = sbr.rel (%p192) target = $region36
      $region35: #{tpu_custom_call.1} parent=5 // pred_region
        %s196 = ssub.s32 %s17, 1
        %s197 = sand.u32 %s30, 1
        %s198 = scalar_lea.sflag [#allocation3], %s197
        %s199 = sand.u32 %s30, 1
        %s200 = smul.addr %s199, 8
        %s201 = scalar_lea.vmem [#allocation2], %s200
        // Predicated region
        $region37: #{tpu_custom_call.1} parent=35 // pred_check
          %p202 = pneg %p43
        $region38: #{tpu_custom_call.1} parent=35 // pred_check_branch
          %204 = sbr.rel (%p202) target = $region40
        $region39: #{tpu_custom_call.1} parent=35 // pred_region
          %206 = dma.done %s198, 128
        $region40: #{tpu_custom_call.1} parent=35 // pred_fallthru
          _
        // Predicated region
        $region41: #{tpu_custom_call.1} parent=35 // pred_check
          %p207 = pneg %p64
        $region42: #{tpu_custom_call.1} parent=35 // pred_check_branch
          %209 = sbr.rel (%p207) target = $region44
        $region43: #{tpu_custom_call.1} parent=35 // pred_region
          %211 = dma.done [#allocation6], 512
        $region44: #{tpu_custom_call.1} parent=35 // pred_fallthru
          _
        %s212 = sand.u32 %s30, 1
        %s213 = scalar_lea.sflag [#allocation3], %s212
        %s214 = sand.u32 %s30, 1
        %s215 = smul.addr %s214, 8
        %s216 = scalar_lea.vmem [#allocation2], %s215
        %p217 = pneg %p43
        %p218 = pneg %p40
        %p219 = pneg %p64
        %p220 = pneg %p61
        %p221 = pneg %p85
        %p222 = pneg %p82
        %p223 = pneg %p106
        %p224 = pneg %p103
        %p225 = pneg %p132
        %p226 = pneg %p129
        %s227 = sand.u32 %s119, 1
        %s228 = scalar_lea.sflag [#allocation4], %s227
        %s229 = sand.u32 %s119, 1
        %s230 = smul.addr %s229, 8
        %s231 = scalar_lea.vmem [#allocation7], %s230
        %v232 = vld [vmem:[%s201] sm:$0xff]
        %v233 = vld [vmem:[#allocation5] sm:$0xff]
        %v234 = vld [vmem:[#allocation5 + $0x8] sm:$0xff]
        %v235 = vld [vmem:[#allocation5 + $0x10] sm:$0xff]
        %v236 = vld [vmem:[#allocation5 + $0x18] sm:$0xff]
        %v237 = vld [vmem:[%s2] sm:$0x1]
        %v239 = vperm.slane %v237, 0
        %v241 = vmul.f32 %v232, %v239
        %vm242 = vcmask 261120
        %v243 = vsel %vm242, %v241, 0.0
        %244 = vadd.xlane.f32.xlu0 %v243
        %v245 = vpop.xlane.xlu0 %244
        %v246 = vsub.f32 %v245, 0.7
        %v247 = vmul.f32 %v246, 6.6666665
        %v248 = vxor.u32 %v247, 2147483648
        %v249 = vmul.f32 %v248, 1.442695
        %v250 = vpow.pop %v249
        %v251 = vadd.f32 %v250, 1.0
        %v252 = vrcp.pop %v251
        %v253 = vmul.f32 %v251, %v252
        %v254 = vsub.f32 1.0, %v253
        %v255 = vmul.f32 %v252, %v254
        %v256 = vadd.f32 %v252, %v255
        %vm257 = vweird.f32 %v251
        %vm258 = vweird.f32 %v252
        %vm259 = vmor %vm257, %vm258
        %v260 = vsel %vm259, %v252, %v256
        %v261 = vand.u32 2147483647, %v251
        %vm262 = vcmp.eq.f32.partialorder %v261, 8.507059e+37
        %v263 = vand.u32 %v251, 2147483648
        %v264 = vor.u32 1.1754944e-38, %v263
        %v265 = vsel %vm262, %v264, %v260
        %v266 = vmul.f32 1.0, %v265
        %v267 = vld [vmem:[%s3] sm:$0x1]
        %v269 = vperm.slane %v267, 0
        %v271 = vmul.f32 %v266, %v269
        %v273 = vsel %vm242, %v232, 0
        %275 = vmatpush.msra.mxu0 0.0
        %276 = vmatpush.msra.mxu0 0.0
        %277 = vmatpush.msra.mxu0 0.0
        %278 = vmatpush.msra.mxu0 0.0
        %279 = vmatpush.msra.mxu0 0.0
        %280 = vmatpush.msra.mxu0 0.0
        %281 = vmatpush.msra.mxu0 0.0
        %282 = vmatpush.msra.mxu0 0.0
        %283 = vmatpush.msra.mxu0 0.0
        %284 = vmatpush.msra.mxu0 0.0
        %285 = vmatpush.msra.mxu0 0.0
        %286 = vmatpush.msra.mxu0 0.0
        %287 = vmatpush.msra.mxu0 %v236
        %288 = vmatpush.msra.mxu0 %v235
        %289 = vmatpush.msra.mxu0 %v234
        %290 = vmatpush.msra.mxu0 %v233
        %291 = vmatmul.f32.gmra.mxu0 %v273
        %v292 = vpop.f32.mrf.mxu0
        %v293 = vadd.f32 %v271, %v292
        %294 = vdwg.mxu0
        %vm295 = vcmask 523264
        %296 = vst.msk [vmem:[%s231] sm:$0xff] %vm295, %v293
        %s297 = sand.u32 %s119, 1
        %s298 = scalar_lea.sflag [#allocation4], %s297
        %s299 = sand.u32 %s119, 1
        %s300 = smul.addr %s299, 8
        %s301 = scalar_lea.vmem [#allocation7], %s300
        // Predicated region
        $region45: #{tpu_custom_call.1} parent=35 // pred_check
          %p302 = pneg %p129
        $region46: #{tpu_custom_call.1} parent=35 // pred_check_branch
          %304 = sbr.rel (%p302) target = $region48
        $region47: #{tpu_custom_call.1} parent=35 // pred_region
          %306 = vsyncadd %s298, 0
          %s307 = smul.addr %s22, 8
          %s308 = scalar_lea.hbm %s4, %s307
          %s310 = sshll.u32 %s301, 4
          %s311 = int_to_ptr.vmem [resolvable:$true] %s310
          %s312 = sshll.u32 %s308, 4
          %s313 = int_to_ptr.hbm [resolvable:$true] %s312
          %315 = dma.vmem_to_hbm [thread:$0]  %s311, 128, %s313, %s298
        $region48: #{tpu_custom_call.1} parent=35 // pred_fallthru
          _
      $region36: #{tpu_custom_call.1} parent=5 // pred_fallthru
        _
      %p316 = scmp.le.s32.totalorder 2, %s17
      // Predicated region
      $region49: #{tpu_custom_call.1} parent=5 // pred_check
        %p317 = pneg %p316
      $region50: #{tpu_custom_call.1} parent=5 // pred_check_branch
        %319 = sbr.rel (%p317) target = $region52
      $region51: #{tpu_custom_call.1} parent=5 // pred_region
        %s320 = ssub.s32 %s17, 2
        // Predicated region
        $region53: #{tpu_custom_call.1} parent=51 // pred_check
          %p321 = pneg %p135
        $region54: #{tpu_custom_call.1} parent=51 // pred_check_branch
          %323 = sbr.rel (%p321) target = $region56
        $region55: #{tpu_custom_call.1} parent=51 // pred_region
          %s324 = sand.u32 %s120, 1
          %s325 = scalar_lea.sflag [#allocation4], %s324
          %s326 = sand.u32 %s120, 1
          %s327 = smul.addr %s326, 8
          %s328 = scalar_lea.vmem [#allocation7], %s327
          %330 = dma.done %s325, 128
        $region56: #{tpu_custom_call.1} parent=51 // pred_fallthru
          _
      $region52: #{tpu_custom_call.1} parent=5 // pred_fallthru
        _
    $region6: #{tpu_custom_call.1} parent=1 // loop_footer
      %s21 = sadd.s32 1, %s17
    $region7: #{tpu_custom_call.1} parent=1 // loop_footer_branch
      %16 = sbr.rel target = $region3
    $region8: #{tpu_custom_call.1} parent=1 // loop_exit
      _
    %331 = vsyncpa [#allocation3], 1
    %s332 = scalar_lea.sflag [#allocation3], 1
    %333 = vsyncpa %s332, 1
    %334 = vsyncpa [#allocation6], 1
    %335 = vsyncpa [#allocation4], 1
    %s336 = scalar_lea.sflag [#allocation4], 1
    %337 = vsyncpa %s336, 1

</llo_original>
